<compile_context>
chip_gen: v5e
topology: v5e:2x2
jax: 0.10.0
libtpu: 0.0.40
codegen_flags: <defaults>
</compile_context>

<pallas_src>
import functools

import jax
import jax.numpy as jnp
from jax.experimental import pallas as pl
from jax.experimental.pallas import tpu as pltpu

MEL = 64
CTX_HALF = 2 * MEL            # 128  (left / right context width)
FRAME_W = 5 * MEL             # 320  (2 left + 1 middle + 2 right frames)
IN_DIM = 4 * MEL              # 256  (encoder input width = left+right)

# flops per row of the 6-layer MLP (2*m*n per matmul)
_FLOPS_PER_ROW = 2 * (128 * 64 + 128 * 64 + 64 * 32 + 32 * 16 +
                      16 * 32 + 32 * 64 + 64 * 64)          # = 51200


def _idnn_kernel(x_ref,
                 w1a_ref, w1b_ref, w2_ref, w3_ref, w4_ref, w5_ref, w6_ref,
                 bias_ref,
                 recon_ref, mid_ref):
    cdt = w1a_ref.dtype   # bf16 compute dtype for MXU operands

    # Fused preprocess: static ref slices of the 320-wide frame tile.
    left = x_ref[:, 0:CTX_HALF].astype(cdt)                 # (tm, 128)
    middle = x_ref[:, CTX_HALF:CTX_HALF + MEL]              # (tm, 64)
    right = x_ref[:, CTX_HALF + MEL:FRAME_W].astype(cdt)    # (tm, 128)

    # Biases live in a single (8, 128) f32 slab, one bias per sublane row,
    # lane offset 0 -> cheap static slices.
    b1 = bias_ref[0:1, 0:64]
    b2 = bias_ref[1:2, 0:32]
    b3 = bias_ref[2:3, 0:16]
    b4 = bias_ref[3:4, 0:32]
    b5 = bias_ref[4:5, 0:64]
    b6 = bias_ref[5:6, 0:64]

    # encoder: Linear(256,64)+ReLU (W1 split left/right), Linear(64,32)+ReLU,
    #          Linear(32,16)+ReLU  -- bf16 operands, f32 accumulation.
    h = jnp.dot(left, w1a_ref[...], preferred_element_type=jnp.float32)
    h = h + jnp.dot(right, w1b_ref[...], preferred_element_type=jnp.float32)
    h = jnp.maximum(h + b1, 0.0)
    h = jnp.maximum(
        jnp.dot(h.astype(cdt), w2_ref[...],
                preferred_element_type=jnp.float32) + b2, 0.0)
    h = jnp.maximum(
        jnp.dot(h.astype(cdt), w3_ref[...],
                preferred_element_type=jnp.float32) + b3, 0.0)
    # decoder: Linear(16,32)+ReLU, Linear(32,64)+ReLU, Linear(64,64)
    h = jnp.maximum(
        jnp.dot(h.astype(cdt), w4_ref[...],
                preferred_element_type=jnp.float32) + b4, 0.0)
    h = jnp.maximum(
        jnp.dot(h.astype(cdt), w5_ref[...],
                preferred_element_type=jnp.float32) + b5, 0.0)
    h = jnp.dot(h.astype(cdt), w6_ref[...],
                preferred_element_type=jnp.float32) + b6

    recon_ref[...] = h.astype(recon_ref.dtype)
    mid_ref[...] = middle.astype(mid_ref.dtype)


def _const_spec(shape):
    # Small resident weight/bias tensors: whole-array block, constant
    # index_map (same block every grid step -> stays resident in VMEM).
    return pl.BlockSpec(shape, lambda i: tuple(0 for _ in shape))


def _round_up(n, m):
    return ((n + m - 1) // m) * m


def _pick_tile(M, tm):
    """Row tile: 8-aligned, never bigger than needed, and chosen so the
    parallel grid axis has >= 2 steps (v7x megacore) when M allows it."""
    half = _round_up(max(pl.cdiv(M, 2), 1), 8)
    return max(8, min(tm, half))


@functools.partial(jax.jit, static_argnames=("tm",))
def idnn_forward(x, params, *, tm=4096):
    """Matches Idnn.forward: x (B, N, 320) -> (recon (B*N, 64), middle (B*N, 64)).

    MXU matmuls use bf16 operands with f32 accumulation (precision tradeoff
    endorsed by the perf review); bias+ReLU stay f32.  Outputs keep x.dtype.
    """
    B, N, FW = x.shape
    assert FW == FRAME_W
    M = B * N

    (w1, b1), (w2, b2), (w3, b3), (w4, b4), (w5, b5), (w6, b6) = params

    cdt = jnp.bfloat16
    # Split W1 so the concat([left, right]) never materializes in HBM.
    w1a = w1[:CTX_HALF, :].astype(cdt)   # applies to left  (128, 64)
    w1b = w1[CTX_HALF:, :].astype(cdt)   # applies to right (128, 64)
    weights = [w1a, w1b, w2.astype(cdt), w3.astype(cdt),
               w4.astype(cdt), w5.astype(cdt), w6.astype(cdt)]

    # Pack the six biases into one (8, 128) f32 slab (one bias per row).
    bias_slab = jnp.zeros((8, 128), jnp.float32)
    for i, b in enumerate([b1, b2, b3, b4, b5, b6]):
        bias_slab = bias_slab.at[i, :b.shape[-1]].set(
            b.reshape(-1).astype(jnp.float32))

    tm_eff = _pick_tile(M, tm)
    grid = (pl.cdiv(M, tm_eff),)    # ragged last block handled by Pallas

    x_flat = x.reshape(M, FRAME_W)  # free reshape, no copy
    odt = x.dtype

    in_specs = [pl.BlockSpec((tm_eff, FRAME_W), lambda i: (i, 0))]
    in_specs += [_const_spec(w.shape) for w in weights]
    in_specs += [_const_spec(bias_slab.shape)]

    out_shape = (jax.ShapeDtypeStruct((M, MEL), odt),
                 jax.ShapeDtypeStruct((M, MEL), odt))
    out_specs = (pl.BlockSpec((tm_eff, MEL), lambda i: (i, 0)),
                 pl.BlockSpec((tm_eff, MEL), lambda i: (i, 0)))

    param_bytes = (sum(w.size * w.dtype.itemsize for w in weights)
                   + bias_slab.size * 4)
    out_itemsize = jnp.dtype(odt).itemsize
    cost = pl.CostEstimate(
        flops=_FLOPS_PER_ROW * M,
        transcendentals=0,
        bytes_accessed=M * (FRAME_W * x.dtype.itemsize + 2 * MEL * out_itemsize)
        + param_bytes,
    )

    recon, middle = pl.pallas_call(
        _idnn_kernel,
        out_shape=out_shape,
        grid=grid,
        in_specs=in_specs,
        out_specs=out_specs,
        compiler_params=pltpu.CompilerParams(
            dimension_semantics=("parallel",),
            vmem_limit_bytes=32 << 20),
        cost_estimate=cost,
    )(x_flat, *weights, bias_slab)
    return recon, middle


def init_params(key):
    """Deterministic Linear params, (in, out) weight layout + (1, out) bias."""
    dims = [(IN_DIM, 64), (64, 32), (32, 16), (16, 32), (32, 64), (64, MEL)]
    params = []
    for i, (din, dout) in enumerate(dims):
        kw, kb = jax.random.split(jax.random.fold_in(key, i))
        bound = 1.0 / jnp.sqrt(din)
        w = jax.random.uniform(kw, (din, dout), jnp.float32, -bound, bound)
        b = jax.random.uniform(kb, (1, dout), jnp.float32, -bound, bound)
        params.append((w, b))
    return params


def _ref_forward_bf16(x, params):
    """Reference matching the kernel's numerics (bf16 operands, f32 accum)."""
    ctx = jnp.concatenate([x[..., :CTX_HALF], x[..., CTX_HALF + MEL:]],
                          axis=-1).reshape(-1, IN_DIM)
    h = ctx
    for idx, (w, b) in enumerate(params):
        h = jnp.dot(h.astype(jnp.bfloat16), w.astype(jnp.bfloat16),
                    preferred_element_type=jnp.float32) + b
        if idx < 5:
            h = jnp.maximum(h, 0.0)
    mid = x[..., CTX_HALF:CTX_HALF + MEL].reshape(-1, MEL)
    return h, mid


def _ref_forward_f32(x, params):
    ctx = jnp.concatenate([x[..., :CTX_HALF], x[..., CTX_HALF + MEL:]],
                          axis=-1).reshape(-1, IN_DIM)
    h = ctx
    for idx, (w, b) in enumerate(params):
        h = h @ w + b
        if idx < 5:
            h = jnp.maximum(h, 0.0)
    mid = x[..., CTX_HALF:CTX_HALF + MEL].reshape(-1, MEL)
    return h, mid


if __name__ == "__main__":
    key = jax.random.PRNGKey(0)
    kx, kp = jax.random.split(key)
    params = init_params(kp)

    # (2, 8): evenly-divided grid with 2 parallel steps.
    # (3, 5): M = 15 -> ragged last block (exercises masked output stores).
    for (B, N) in [(2, 8), (3, 5)]:
        x = jax.random.normal(jax.random.fold_in(kx, B * 100 + N),
                              (B, N, FRAME_W), jnp.float32)
        recon, middle = idnn_forward(x, params)
        jax.block_until_ready((recon, middle))

        assert recon.shape == (B * N, MEL) and middle.shape == (B * N, MEL)

        r_bf16, m_ref = _ref_forward_bf16(x, params)
        r_f32, _ = _ref_forward_f32(x, params)

        assert jnp.allclose(recon, r_bf16, atol=2e-3, rtol=2e-3), \
            f"recon mismatch vs bf16 reference (B={B}, N={N})"
        assert jnp.allclose(recon, r_f32, atol=5e-2, rtol=5e-2), \
            f"recon drifted too far from f32 reference (B={B}, N={N})"
        assert jnp.allclose(middle, m_ref), \
            f"middle frame mismatch (B={B}, N={N})"

    print("KERNEL_OK")
</pallas_src>

<mosaic_0001>
module attributes {stable_mosaic.version = 11 : i64} {
  func.func @_idnn_kernel(%arg0: i32, %arg1: memref<8x320xf32, #tpu.memory_space<vmem>>, %arg2: memref<128x64xbf16, #tpu.memory_space<vmem>>, %arg3: memref<128x64xbf16, #tpu.memory_space<vmem>>, %arg4: memref<64x32xbf16, #tpu.memory_space<vmem>>, %arg5: memref<32x16xbf16, #tpu.memory_space<vmem>>, %arg6: memref<16x32xbf16, #tpu.memory_space<vmem>>, %arg7: memref<32x64xbf16, #tpu.memory_space<vmem>>, %arg8: memref<64x64xbf16, #tpu.memory_space<vmem>>, %arg9: memref<8x128xf32, #tpu.memory_space<vmem>>, %arg10: memref<8x64xf32, #tpu.memory_space<vmem>>, %arg11: memref<8x64xf32, #tpu.memory_space<vmem>>) attributes {dimension_semantics = [#tpu.dimension_semantics<parallel>], iteration_bounds = array<i64: 2>, scalar_prefetch = 0 : i64, scratch_operands = 0 : i64, tpu.core_type = #tpu.core_type<tc>, window_params = [{transform_indices = @transform_0, window_bounds = array<i64: 8, 320>}, {pipeline_mode = #tpu.pipeline_mode<synchronous>, transform_indices = @transform_1, window_bounds = array<i64: 128, 64>}, {pipeline_mode = #tpu.pipeline_mode<synchronous>, transform_indices = @transform_2, window_bounds = array<i64: 128, 64>}, {pipeline_mode = #tpu.pipeline_mode<synchronous>, transform_indices = @transform_3, window_bounds = array<i64: 64, 32>}, {pipeline_mode = #tpu.pipeline_mode<synchronous>, transform_indices = @transform_4, window_bounds = array<i64: 32, 16>}, {pipeline_mode = #tpu.pipeline_mode<synchronous>, transform_indices = @transform_5, window_bounds = array<i64: 16, 32>}, {pipeline_mode = #tpu.pipeline_mode<synchronous>, transform_indices = @transform_6, window_bounds = array<i64: 32, 64>}, {pipeline_mode = #tpu.pipeline_mode<synchronous>, transform_indices = @transform_7, window_bounds = array<i64: 64, 64>}, {pipeline_mode = #tpu.pipeline_mode<synchronous>, transform_indices = @transform_8, window_bounds = array<i64: 8, 128>}, {transform_indices = @transform_9, window_bounds = array<i64: 8, 64>}, {transform_indices = @transform_10, window_bounds = array<i64: 8, 64>}]} {
    %c0 = arith.constant 0 : index
    %c0_0 = arith.constant 0 : index
    %0 = vector.load %arg1[%c0, %c0_0] : memref<8x320xf32, #tpu.memory_space<vmem>>, vector<8x128xf32>
    %1 = arith.truncf %0 : vector<8x128xf32> to vector<8x128xbf16>
    %c0_1 = arith.constant 0 : index
    %c128 = arith.constant 128 : index
    %2 = vector.load %arg1[%c0_1, %c128] : memref<8x320xf32, #tpu.memory_space<vmem>>, vector<8x64xf32>
    %c0_2 = arith.constant 0 : index
    %c192 = arith.constant 192 : index
    %3 = vector.load %arg1[%c0_2, %c192] : memref<8x320xf32, #tpu.memory_space<vmem>>, vector<8x128xf32>
    %4 = arith.truncf %3 : vector<8x128xf32> to vector<8x128xbf16>
    %c0_3 = arith.constant 0 : index
    %c0_4 = arith.constant 0 : index
    %5 = vector.load %arg9[%c0_3, %c0_4] : memref<8x128xf32, #tpu.memory_space<vmem>>, vector<1x64xf32>
    %c1 = arith.constant 1 : index
    %c0_5 = arith.constant 0 : index
    %6 = vector.load %arg9[%c1, %c0_5] : memref<8x128xf32, #tpu.memory_space<vmem>>, vector<1x32xf32>
    %c2 = arith.constant 2 : index
    %c0_6 = arith.constant 0 : index
    %7 = vector.load %arg9[%c2, %c0_6] : memref<8x128xf32, #tpu.memory_space<vmem>>, vector<1x16xf32>
    %c3 = arith.constant 3 : index
    %c0_7 = arith.constant 0 : index
    %8 = vector.load %arg9[%c3, %c0_7] : memref<8x128xf32, #tpu.memory_space<vmem>>, vector<1x32xf32>
    %c4 = arith.constant 4 : index
    %c0_8 = arith.constant 0 : index
    %9 = vector.load %arg9[%c4, %c0_8] : memref<8x128xf32, #tpu.memory_space<vmem>>, vector<1x64xf32>
    %c5 = arith.constant 5 : index
    %c0_9 = arith.constant 0 : index
    %10 = vector.load %arg9[%c5, %c0_9] : memref<8x128xf32, #tpu.memory_space<vmem>>, vector<1x64xf32>
    %c0_10 = arith.constant 0 : index
    %c0_11 = arith.constant 0 : index
    %11 = vector.load %arg2[%c0_10, %c0_11] : memref<128x64xbf16, #tpu.memory_space<vmem>>, vector<128x64xbf16>
    %cst = arith.constant dense<0.000000e+00> : vector<8x64xf32>
    %12 = tpu.matmul %1, %11, %cst {dimension_numbers = #tpu.dot_dimension_numbers<[1], [0], [0], [1], [0, 0, 1, 1], [], []>} : vector<8x128xbf16>, vector<128x64xbf16>, vector<8x64xf32> -> vector<8x64xf32>
    %c0_12 = arith.constant 0 : index
    %c0_13 = arith.constant 0 : index
    %13 = vector.load %arg3[%c0_12, %c0_13] : memref<128x64xbf16, #tpu.memory_space<vmem>>, vector<128x64xbf16>
    %cst_14 = arith.constant dense<0.000000e+00> : vector<8x64xf32>
    %14 = tpu.matmul %4, %13, %cst_14 {dimension_numbers = #tpu.dot_dimension_numbers<[1], [0], [0], [1], [0, 0, 1, 1], [], []>} : vector<8x128xbf16>, vector<128x64xbf16>, vector<8x64xf32> -> vector<8x64xf32>
    %15 = arith.addf %12, %14 : vector<8x64xf32>
    %16 = vector.broadcast %5 : vector<1x64xf32> to vector<8x64xf32>
    %17 = arith.addf %15, %16 : vector<8x64xf32>
    %cst_15 = arith.constant 0.000000e+00 : f32
    %18 = vector.broadcast %cst_15 : f32 to vector<8x64xf32>
    %19 = arith.maximumf %17, %18 : vector<8x64xf32>
    %20 = arith.truncf %19 : vector<8x64xf32> to vector<8x64xbf16>
    %c0_16 = arith.constant 0 : index
    %c0_17 = arith.constant 0 : index
    %21 = vector.load %arg4[%c0_16, %c0_17] : memref<64x32xbf16, #tpu.memory_space<vmem>>, vector<64x32xbf16>
    %cst_18 = arith.constant dense<0.000000e+00> : vector<8x32xf32>
    %22 = tpu.matmul %20, %21, %cst_18 {dimension_numbers = #tpu.dot_dimension_numbers<[1], [0], [0], [1], [0, 0, 1, 1], [], []>} : vector<8x64xbf16>, vector<64x32xbf16>, vector<8x32xf32> -> vector<8x32xf32>
    %23 = vector.broadcast %6 : vector<1x32xf32> to vector<8x32xf32>
    %24 = arith.addf %22, %23 : vector<8x32xf32>
    %cst_19 = arith.constant 0.000000e+00 : f32
    %25 = vector.broadcast %cst_19 : f32 to vector<8x32xf32>
    %26 = arith.maximumf %24, %25 : vector<8x32xf32>
    %27 = arith.truncf %26 : vector<8x32xf32> to vector<8x32xbf16>
    %c0_20 = arith.constant 0 : index
    %c0_21 = arith.constant 0 : index
    %28 = vector.load %arg5[%c0_20, %c0_21] : memref<32x16xbf16, #tpu.memory_space<vmem>>, vector<32x16xbf16>
    %cst_22 = arith.constant dense<0.000000e+00> : vector<8x16xf32>
    %29 = tpu.matmul %27, %28, %cst_22 {dimension_numbers = #tpu.dot_dimension_numbers<[1], [0], [0], [1], [0, 0, 1, 1], [], []>} : vector<8x32xbf16>, vector<32x16xbf16>, vector<8x16xf32> -> vector<8x16xf32>
    %30 = vector.broadcast %7 : vector<1x16xf32> to vector<8x16xf32>
    %31 = arith.addf %29, %30 : vector<8x16xf32>
    %cst_23 = arith.constant 0.000000e+00 : f32
    %32 = vector.broadcast %cst_23 : f32 to vector<8x16xf32>
    %33 = arith.maximumf %31, %32 : vector<8x16xf32>
    %34 = arith.truncf %33 : vector<8x16xf32> to vector<8x16xbf16>
    %c0_24 = arith.constant 0 : index
    %c0_25 = arith.constant 0 : index
    %35 = vector.load %arg6[%c0_24, %c0_25] : memref<16x32xbf16, #tpu.memory_space<vmem>>, vector<16x32xbf16>
    %cst_26 = arith.constant dense<0.000000e+00> : vector<8x32xf32>
    %36 = tpu.matmul %34, %35, %cst_26 {dimension_numbers = #tpu.dot_dimension_numbers<[1], [0], [0], [1], [0, 0, 1, 1], [], []>} : vector<8x16xbf16>, vector<16x32xbf16>, vector<8x32xf32> -> vector<8x32xf32>
    %37 = vector.broadcast %8 : vector<1x32xf32> to vector<8x32xf32>
    %38 = arith.addf %36, %37 : vector<8x32xf32>
    %cst_27 = arith.constant 0.000000e+00 : f32
    %39 = vector.broadcast %cst_27 : f32 to vector<8x32xf32>
    %40 = arith.maximumf %38, %39 : vector<8x32xf32>
    %41 = arith.truncf %40 : vector<8x32xf32> to vector<8x32xbf16>
    %c0_28 = arith.constant 0 : index
    %c0_29 = arith.constant 0 : index
    %42 = vector.load %arg7[%c0_28, %c0_29] : memref<32x64xbf16, #tpu.memory_space<vmem>>, vector<32x64xbf16>
    %cst_30 = arith.constant dense<0.000000e+00> : vector<8x64xf32>
    %43 = tpu.matmul %41, %42, %cst_30 {dimension_numbers = #tpu.dot_dimension_numbers<[1], [0], [0], [1], [0, 0, 1, 1], [], []>} : vector<8x32xbf16>, vector<32x64xbf16>, vector<8x64xf32> -> vector<8x64xf32>
    %44 = vector.broadcast %9 : vector<1x64xf32> to vector<8x64xf32>
    %45 = arith.addf %43, %44 : vector<8x64xf32>
    %cst_31 = arith.constant 0.000000e+00 : f32
    %46 = vector.broadcast %cst_31 : f32 to vector<8x64xf32>
    %47 = arith.maximumf %45, %46 : vector<8x64xf32>
    %48 = arith.truncf %47 : vector<8x64xf32> to vector<8x64xbf16>
    %c0_32 = arith.constant 0 : index
    %c0_33 = arith.constant 0 : index
    %49 = vector.load %arg8[%c0_32, %c0_33] : memref<64x64xbf16, #tpu.memory_space<vmem>>, vector<64x64xbf16>
    %cst_34 = arith.constant dense<0.000000e+00> : vector<8x64xf32>
    %50 = tpu.matmul %48, %49, %cst_34 {dimension_numbers = #tpu.dot_dimension_numbers<[1], [0], [0], [1], [0, 0, 1, 1], [], []>} : vector<8x64xbf16>, vector<64x64xbf16>, vector<8x64xf32> -> vector<8x64xf32>
    %51 = vector.broadcast %10 : vector<1x64xf32> to vector<8x64xf32>
    %52 = arith.addf %50, %51 : vector<8x64xf32>
    %c0_35 = arith.constant 0 : index
    %c0_36 = arith.constant 0 : index
    %53 = vector.load %arg10[%c0_35, %c0_36] : memref<8x64xf32, #tpu.memory_space<vmem>>, vector<8x64xf32>
    tpu.vector_store %arg10[%c0_35, %c0_36], %52 {strides = array<i32>} : memref<8x64xf32, #tpu.memory_space<vmem>>, vector<8x64xf32>,
    %c0_37 = arith.constant 0 : index
    %c0_38 = arith.constant 0 : index
    %54 = vector.load %arg11[%c0_37, %c0_38] : memref<8x64xf32, #tpu.memory_space<vmem>>, vector<8x64xf32>
    tpu.vector_store %arg11[%c0_37, %c0_38], %2 {strides = array<i32>} : memref<8x64xf32, #tpu.memory_space<vmem>>, vector<8x64xf32>,
    return
  }
  func.func @transform_0(%arg0: i32) -> (i32, i32) {
    %c0_i32 = arith.constant 0 : i32
    %c0_i32_0 = arith.constant 0 : i32
    return %arg0, %c0_i32 : i32, i32
  }
  func.func @transform_1(%arg0: i32) -> (i32, i32) {
    %c0_i32 = arith.constant 0 : i32
    %c0_i32_0 = arith.constant 0 : i32
    %c0_i32_1 = arith.constant 0 : i32
    return %c0_i32, %c0_i32_0 : i32, i32
  }
  func.func @transform_2(%arg0: i32) -> (i32, i32) {
    %c0_i32 = arith.constant 0 : i32
    %c0_i32_0 = arith.constant 0 : i32
    %c0_i32_1 = arith.constant 0 : i32
    return %c0_i32, %c0_i32_0 : i32, i32
  }
  func.func @transform_3(%arg0: i32) -> (i32, i32) {
    %c0_i32 = arith.constant 0 : i32
    %c0_i32_0 = arith.constant 0 : i32
    %c0_i32_1 = arith.constant 0 : i32
    return %c0_i32, %c0_i32_0 : i32, i32
  }
  func.func @transform_4(%arg0: i32) -> (i32, i32) {
    %c0_i32 = arith.constant 0 : i32
    %c0_i32_0 = arith.constant 0 : i32
    %c0_i32_1 = arith.constant 0 : i32
    return %c0_i32, %c0_i32_0 : i32, i32
  }
  func.func @transform_5(%arg0: i32) -> (i32, i32) {
    %c0_i32 = arith.constant 0 : i32
    %c0_i32_0 = arith.constant 0 : i32
    %c0_i32_1 = arith.constant 0 : i32
    return %c0_i32, %c0_i32_0 : i32, i32
  }
  func.func @transform_6(%arg0: i32) -> (i32, i32) {
    %c0_i32 = arith.constant 0 : i32
    %c0_i32_0 = arith.constant 0 : i32
    %c0_i32_1 = arith.constant 0 : i32
    return %c0_i32, %c0_i32_0 : i32, i32
  }
  func.func @transform_7(%arg0: i32) -> (i32, i32) {
    %c0_i32 = arith.constant 0 : i32
    %c0_i32_0 = arith.constant 0 : i32
    %c0_i32_1 = arith.constant 0 : i32
    return %c0_i32, %c0_i32_0 : i32, i32
  }
  func.func @transform_8(%arg0: i32) -> (i32, i32) {
    %c0_i32 = arith.constant 0 : i32
    %c0_i32_0 = arith.constant 0 : i32
    %c0_i32_1 = arith.constant 0 : i32
    return %c0_i32, %c0_i32_0 : i32, i32
  }
  func.func @transform_9(%arg0: i32) -> (i32, i32) {
    %c0_i32 = arith.constant 0 : i32
    %c0_i32_0 = arith.constant 0 : i32
    return %arg0, %c0_i32 : i32, i32
  }
  func.func @transform_10(%arg0: i32) -> (i32, i32) {
    %c0_i32 = arith.constant 0 : i32
    %c0_i32_0 = arith.constant 0 : i32
    return %arg0, %c0_i32 : i32, i32
  }
}

</mosaic_0001>

<llo_original>
// kernel: idnn_forward.1
$region0: #{idnn_forward.1}
  #allocation0 [shape = 'u32[]', space=smem, size = 0x4, offset = 0x4, fixed_abs, tag = 'smem constant byte address 0x4 - core index']
  #allocation1 [shape = 'u32[72,128]{1,0:T(1,128)}', space=vmem, size = 0x9000, scoped, tag = 'internal scratch']
  %s0 = inlined_call_operand.vmem [shape: f32[16,320], index: 0, kind: input, shape index: {}]
  %s1 = inlined_call_operand.vmem [shape: bf16[128,64], index: 1, kind: input, shape index: {}]
  %s2 = inlined_call_operand.vmem [shape: bf16[128,64], index: 2, kind: input, shape index: {}]
  %s3 = inlined_call_operand.vmem [shape: bf16[64,32], index: 3, kind: input, shape index: {}]
  %s4 = inlined_call_operand.vmem [shape: bf16[32,16], index: 4, kind: input, shape index: {}]
  %s5 = inlined_call_operand.vmem [shape: bf16[16,32], index: 5, kind: input, shape index: {}]
  %s6 = inlined_call_operand.vmem [shape: bf16[32,64], index: 6, kind: input, shape index: {}]
  %s7 = inlined_call_operand.vmem [shape: bf16[64,64], index: 7, kind: input, shape index: {}]
  %s8 = inlined_call_operand.vmem [shape: f32[8,128], index: 8, kind: input, shape index: {}]
  %s9 = inlined_call_operand.hbm [shape: f32[16,64], index: 9, kind: output, shape index: {0}]
  %s10 = inlined_call_operand.hbm [shape: f32[16,64], index: 10, kind: output, shape index: {1}]
  %11 = xla_tuple %s9, %s10
  %s12 = sld [smem:[#allocation0]]
  $region77: #{idnn_forward.1} parent=0
    _
  %s14 = ssub.s32 1, %s12
  %s15 = scalar_select 0, %s14, %s12
  $region1: #{idnn_forward.1} parent=0
    #allocation2 [shape = 'u8[8192]{0}', space=vmem, size = 0x2000, scoped, tag = 'output window, operand 0']
    #allocation3 [shape = 's32[2]{0}', space=sflag, size = 0x8, scoped, tag = 'scoped memory for idnn_forward.1']
    #allocation4 [shape = 'u8[8192]{0}', space=vmem, size = 0x2000, scoped, tag = 'output window, operand 1']
    #allocation5 [shape = 's32[2]{0}', space=sflag, size = 0x8, scoped, tag = 'scoped memory for idnn_forward.1']
    %16 = vsyncpa [#allocation3], 0
    %s17 = scalar_lea.sflag [#allocation3], 1
    %18 = vsyncpa %s17, 0
    %19 = vsyncpa [#allocation5], 0
    %s20 = scalar_lea.sflag [#allocation5], 1
    %21 = vsyncpa %s20, 0
    loop: start=0, step=1, limit=4
    $region2: #{idnn_forward.1} parent=1 // loop_pre_header
      _
    $region3: #{idnn_forward.1} parent=1 // loop_header
      %s23 = sphi 0, %s27
      %p24 = scmp.ge.s32.totalorder %s23, 4
      %s33 = sphi 0, %s35
      %s36 = sphi 0, %s33
      %s37 = sphi 0, %s36
      %s53 = sphi 0, %s37
      %s57 = sphi 0, %s57
      %s59 = sphi 0, %s57
      %s60 = sphi 0, %s59
      %s74 = sphi 0, %s60
      %s78 = sphi 0, %s78
      %s80 = sphi 0, %s78
      %s81 = sphi 0, %s80
      %s95 = sphi 0, %s81
      %s99 = sphi 0, %s99
      %s101 = sphi 0, %s99
      %s102 = sphi 0, %s101
      %s116 = sphi 0, %s102
      %s120 = sphi 0, %s120
      %s122 = sphi 0, %s120
      %s123 = sphi 0, %s122
      %s137 = sphi 0, %s123
      %s141 = sphi 0, %s141
      %s143 = sphi 0, %s141
      %s144 = sphi 0, %s143
      %s158 = sphi 0, %s144
      %s162 = sphi 0, %s162
      %s164 = sphi 0, %s162
      %s165 = sphi 0, %s164
      %s179 = sphi 0, %s165
      %s183 = sphi 0, %s183
      %s185 = sphi 0, %s183
      %s186 = sphi 0, %s185
      %s200 = sphi 0, %s186
      %s204 = sphi 0, %s204
      %s206 = sphi 0, %s204
      %s207 = sphi 0, %s206
      %s221 = sphi 0, %s207
      %s227 = sphi 0, %s229
      %s230 = sphi 0, %s227
      %s231 = sphi 0, %s230
      %s247 = sphi 0, %s231
      %s253 = sphi 0, %s255
      %s256 = sphi 0, %s253
      %s257 = sphi 0, %s256
      %s273 = sphi 0, %s257
    $region4: #{idnn_forward.1} parent=1 // loop_header_branch
      %26 = sbr.rel (%p24) target = $region8
    $region5: #{idnn_forward.1} parent=1 // loop_body
      %s28 = ssub.s32 %s23, 1
      %s29 = ssub.s32 %s23, 2
      %s30 = sadd.s32 %s23, 1
      %s31 = ssub.s32 %s23, %s30
      %p32 = scmp.eq.s32.totalorder %s31, 0
      %s34 = sadd.s32 %s33, 1
      %s35 = scalar_select %p32, %s33, %s34
      %p38 = pneg %p32
      %p39 = scmp.eq.s32.totalorder %s23, 1
      %p40 = por %p38, %p39
      %p41 = scmp.ne.s32.totalorder %s33, %s36
      %p42 = scmp.eq.s32.totalorder %s23, 0
      %p43 = por %p41, %p42
      %p44 = scmp.ne.s32.totalorder %s33, %s36
      %p45 = scmp.eq.s32.totalorder %s28, 1
      %p46 = por %p44, %p45
      %p47 = scmp.ne.s32.totalorder %s36, %s37
      %p48 = scmp.eq.s32.totalorder %s28, 0
      %p49 = por %p47, %p48
      %p50 = scmp.ne.s32.totalorder %s36, %s37
      %p51 = scmp.eq.s32.totalorder %s29, 1
      %p52 = por %p50, %p51
      %p54 = scmp.ne.s32.totalorder %s37, %s53
      %p55 = scmp.eq.s32.totalorder %s29, 0
      %p56 = por %p54, %p55
      %s58 = sadd.s32 %s57, 1
      %p61 = scmp.eq.s32.totalorder %s23, 1
      %p62 = scmp.ne.s32.totalorder %s57, %s59
      %p63 = scmp.eq.s32.totalorder %s23, 0
      %p64 = por %p62, %p63
      %p65 = scmp.ne.s32.totalorder %s57, %s59
      %p66 = scmp.eq.s32.totalorder %s28, 1
      %p67 = por %p65, %p66
      %p68 = scmp.ne.s32.totalorder %s59, %s60
      %p69 = scmp.eq.s32.totalorder %s28, 0
      %p70 = por %p68, %p69
      %p71 = scmp.ne.s32.totalorder %s59, %s60
      %p72 = scmp.eq.s32.totalorder %s29, 1
      %p73 = por %p71, %p72
      %p75 = scmp.ne.s32.totalorder %s60, %s74
      %p76 = scmp.eq.s32.totalorder %s29, 0
      %p77 = por %p75, %p76
      %s79 = sadd.s32 %s78, 1
      %p82 = scmp.eq.s32.totalorder %s23, 1
      %p83 = scmp.ne.s32.totalorder %s78, %s80
      %p84 = scmp.eq.s32.totalorder %s23, 0
      %p85 = por %p83, %p84
      %p86 = scmp.ne.s32.totalorder %s78, %s80
      %p87 = scmp.eq.s32.totalorder %s28, 1
      %p88 = por %p86, %p87
      %p89 = scmp.ne.s32.totalorder %s80, %s81
      %p90 = scmp.eq.s32.totalorder %s28, 0
      %p91 = por %p89, %p90
      %p92 = scmp.ne.s32.totalorder %s80, %s81
      %p93 = scmp.eq.s32.totalorder %s29, 1
      %p94 = por %p92, %p93
      %p96 = scmp.ne.s32.totalorder %s81, %s95
      %p97 = scmp.eq.s32.totalorder %s29, 0
      %p98 = por %p96, %p97
      %s100 = sadd.s32 %s99, 1
      %p103 = scmp.eq.s32.totalorder %s23, 1
      %p104 = scmp.ne.s32.totalorder %s99, %s101
      %p105 = scmp.eq.s32.totalorder %s23, 0
      %p106 = por %p104, %p105
      %p107 = scmp.ne.s32.totalorder %s99, %s101
      %p108 = scmp.eq.s32.totalorder %s28, 1
      %p109 = por %p107, %p108
      %p110 = scmp.ne.s32.totalorder %s101, %s102
      %p111 = scmp.eq.s32.totalorder %s28, 0
      %p112 = por %p110, %p111
      %p113 = scmp.ne.s32.totalorder %s101, %s102
      %p114 = scmp.eq.s32.totalorder %s29, 1
      %p115 = por %p113, %p114
      %p117 = scmp.ne.s32.totalorder %s102, %s116
      %p118 = scmp.eq.s32.totalorder %s29, 0
      %p119 = por %p117, %p118
      %s121 = sadd.s32 %s120, 1
      %p124 = scmp.eq.s32.totalorder %s23, 1
      %p125 = scmp.ne.s32.totalorder %s120, %s122
      %p126 = scmp.eq.s32.totalorder %s23, 0
      %p127 = por %p125, %p126
      %p128 = scmp.ne.s32.totalorder %s120, %s122
      %p129 = scmp.eq.s32.totalorder %s28, 1
      %p130 = por %p128, %p129
      %p131 = scmp.ne.s32.totalorder %s122, %s123
      %p132 = scmp.eq.s32.totalorder %s28, 0
      %p133 = por %p131, %p132
      %p134 = scmp.ne.s32.totalorder %s122, %s123
      %p135 = scmp.eq.s32.totalorder %s29, 1
      %p136 = por %p134, %p135
      %p138 = scmp.ne.s32.totalorder %s123, %s137
      %p139 = scmp.eq.s32.totalorder %s29, 0
      %p140 = por %p138, %p139
      %s142 = sadd.s32 %s141, 1
      %p145 = scmp.eq.s32.totalorder %s23, 1
      %p146 = scmp.ne.s32.totalorder %s141, %s143
      %p147 = scmp.eq.s32.totalorder %s23, 0
      %p148 = por %p146, %p147
      %p149 = scmp.ne.s32.totalorder %s141, %s143
      %p150 = scmp.eq.s32.totalorder %s28, 1
      %p151 = por %p149, %p150
      %p152 = scmp.ne.s32.totalorder %s143, %s144
      %p153 = scmp.eq.s32.totalorder %s28, 0
      %p154 = por %p152, %p153
      %p155 = scmp.ne.s32.totalorder %s143, %s144
      %p156 = scmp.eq.s32.totalorder %s29, 1
      %p157 = por %p155, %p156
      %p159 = scmp.ne.s32.totalorder %s144, %s158
      %p160 = scmp.eq.s32.totalorder %s29, 0
      %p161 = por %p159, %p160
      %s163 = sadd.s32 %s162, 1
      %p166 = scmp.eq.s32.totalorder %s23, 1
      %p167 = scmp.ne.s32.totalorder %s162, %s164
      %p168 = scmp.eq.s32.totalorder %s23, 0
      %p169 = por %p167, %p168
      %p170 = scmp.ne.s32.totalorder %s162, %s164
      %p171 = scmp.eq.s32.totalorder %s28, 1
      %p172 = por %p170, %p171
      %p173 = scmp.ne.s32.totalorder %s164, %s165
      %p174 = scmp.eq.s32.totalorder %s28, 0
      %p175 = por %p173, %p174
      %p176 = scmp.ne.s32.totalorder %s164, %s165
      %p177 = scmp.eq.s32.totalorder %s29, 1
      %p178 = por %p176, %p177
      %p180 = scmp.ne.s32.totalorder %s165, %s179
      %p181 = scmp.eq.s32.totalorder %s29, 0
      %p182 = por %p180, %p181
      %s184 = sadd.s32 %s183, 1
      %p187 = scmp.eq.s32.totalorder %s23, 1
      %p188 = scmp.ne.s32.totalorder %s183, %s185
      %p189 = scmp.eq.s32.totalorder %s23, 0
      %p190 = por %p188, %p189
      %p191 = scmp.ne.s32.totalorder %s183, %s185
      %p192 = scmp.eq.s32.totalorder %s28, 1
      %p193 = por %p191, %p192
      %p194 = scmp.ne.s32.totalorder %s185, %s186
      %p195 = scmp.eq.s32.totalorder %s28, 0
      %p196 = por %p194, %p195
      %p197 = scmp.ne.s32.totalorder %s185, %s186
      %p198 = scmp.eq.s32.totalorder %s29, 1
      %p199 = por %p197, %p198
      %p201 = scmp.ne.s32.totalorder %s186, %s200
      %p202 = scmp.eq.s32.totalorder %s29, 0
      %p203 = por %p201, %p202
      %s205 = sadd.s32 %s204, 1
      %p208 = scmp.eq.s32.totalorder %s23, 1
      %p209 = scmp.ne.s32.totalorder %s204, %s206
      %p210 = scmp.eq.s32.totalorder %s23, 0
      %p211 = por %p209, %p210
      %p212 = scmp.ne.s32.totalorder %s204, %s206
      %p213 = scmp.eq.s32.totalorder %s28, 1
      %p214 = por %p212, %p213
      %p215 = scmp.ne.s32.totalorder %s206, %s207
      %p216 = scmp.eq.s32.totalorder %s28, 0
      %p217 = por %p215, %p216
      %p218 = scmp.ne.s32.totalorder %s206, %s207
      %p219 = scmp.eq.s32.totalorder %s29, 1
      %p220 = por %p218, %p219
      %p222 = scmp.ne.s32.totalorder %s207, %s221
      %p223 = scmp.eq.s32.totalorder %s29, 0
      %p224 = por %p222, %p223
      %s225 = ssub.s32 %s23, %s30
      %p226 = scmp.eq.s32.totalorder %s225, 0
      %s228 = sadd.s32 %s227, 1
      %s229 = scalar_select %p226, %s227, %s228
      %p232 = pneg %p226
      %p233 = scmp.eq.s32.totalorder %s23, 1
      %p234 = por %p232, %p233
      %p235 = scmp.ne.s32.totalorder %s227, %s230
      %p236 = scmp.eq.s32.totalorder %s23, 0
      %p237 = por %p235, %p236
      %p238 = scmp.ne.s32.totalorder %s227, %s230
      %p239 = scmp.eq.s32.totalorder %s28, 1
      %p240 = por %p238, %p239
      %p241 = scmp.ne.s32.totalorder %s230, %s231
      %p242 = scmp.eq.s32.totalorder %s28, 0
      %p243 = por %p241, %p242
      %p244 = scmp.ne.s32.totalorder %s230, %s231
      %p245 = scmp.eq.s32.totalorder %s29, 1
      %p246 = por %p244, %p245
      %p248 = scmp.ne.s32.totalorder %s231, %s247
      %p249 = scmp.eq.s32.totalorder %s29, 0
      %p250 = por %p248, %p249
      %s251 = ssub.s32 %s23, %s30
      %p252 = scmp.eq.s32.totalorder %s251, 0
      %s254 = sadd.s32 %s253, 1
      %s255 = scalar_select %p252, %s253, %s254
      %p258 = pneg %p252
      %p259 = scmp.eq.s32.totalorder %s23, 1
      %p260 = por %p258, %p259
      %p261 = scmp.ne.s32.totalorder %s253, %s256
      %p262 = scmp.eq.s32.totalorder %s23, 0
      %p263 = por %p261, %p262
      %p264 = scmp.ne.s32.totalorder %s253, %s256
      %p265 = scmp.eq.s32.totalorder %s28, 1
      %p266 = por %p264, %p265
      %p267 = scmp.ne.s32.totalorder %s256, %s257
      %p268 = scmp.eq.s32.totalorder %s28, 0
      %p269 = por %p267, %p268
      %p270 = scmp.ne.s32.totalorder %s256, %s257
      %p271 = scmp.eq.s32.totalorder %s29, 1
      %p272 = por %p270, %p271
      %p274 = scmp.ne.s32.totalorder %s257, %s273
      %p275 = scmp.eq.s32.totalorder %s29, 0
      %p276 = por %p274, %p275
      %p277 = scmp.le.s32.totalorder 1, %s23
      %p278 = scmp.lt.s32.totalorder %s23, 3
      %p279 = pnand %p277, %p278
      %p280 = pneg %p279
      // Predicated region
      $region9: #{idnn_forward.1} parent=5 // pred_check
        _
      $region10: #{idnn_forward.1} parent=5 // pred_check_branch
        %282 = sbr.rel (%p279) target = $region12
      $region11: #{idnn_forward.1} parent=5 // pred_region
        %s283 = ssub.s32 %s23, 1
        // Predicated region
        $region13: #{idnn_forward.1} parent=11 // pred_check
          %p284 = pneg %p70
        $region14: #{idnn_forward.1} parent=11 // pred_check_branch
          %286 = sbr.rel (%p284) target = $region16
        $region15: #{idnn_forward.1} parent=11 // pred_region
          _
        $region16: #{idnn_forward.1} parent=11 // pred_fallthru
          _
        // Predicated region
        $region17: #{idnn_forward.1} parent=11 // pred_check
          %p287 = pneg %p91
        $region18: #{idnn_forward.1} parent=11 // pred_check_branch
          %289 = sbr.rel (%p287) target = $region20
        $region19: #{idnn_forward.1} parent=11 // pred_region
          _
        $region20: #{idnn_forward.1} parent=11 // pred_fallthru
          _
        // Predicated region
        $region21: #{idnn_forward.1} parent=11 // pred_check
          %p290 = pneg %p112
        $region22: #{idnn_forward.1} parent=11 // pred_check_branch
          %292 = sbr.rel (%p290) target = $region24
        $region23: #{idnn_forward.1} parent=11 // pred_region
          _
        $region24: #{idnn_forward.1} parent=11 // pred_fallthru
          _
        // Predicated region
        $region25: #{idnn_forward.1} parent=11 // pred_check
          %p293 = pneg %p133
        $region26: #{idnn_forward.1} parent=11 // pred_check_branch
          %295 = sbr.rel (%p293) target = $region28
        $region27: #{idnn_forward.1} parent=11 // pred_region
          _
        $region28: #{idnn_forward.1} parent=11 // pred_fallthru
          _
        // Predicated region
        $region29: #{idnn_forward.1} parent=11 // pred_check
          %p296 = pneg %p154
        $region30: #{idnn_forward.1} parent=11 // pred_check_branch
          %298 = sbr.rel (%p296) target = $region32
        $region31: #{idnn_forward.1} parent=11 // pred_region
          _
        $region32: #{idnn_forward.1} parent=11 // pred_fallthru
          _
        // Predicated region
        $region33: #{idnn_forward.1} parent=11 // pred_check
          %p299 = pneg %p175
        $region34: #{idnn_forward.1} parent=11 // pred_check_branch
          %301 = sbr.rel (%p299) target = $region36
        $region35: #{idnn_forward.1} parent=11 // pred_region
          _
        $region36: #{idnn_forward.1} parent=11 // pred_fallthru
          _
        // Predicated region
        $region37: #{idnn_forward.1} parent=11 // pred_check
          %p302 = pneg %p196
        $region38: #{idnn_forward.1} parent=11 // pred_check_branch
          %304 = sbr.rel (%p302) target = $region40
        $region39: #{idnn_forward.1} parent=11 // pred_region
          _
        $region40: #{idnn_forward.1} parent=11 // pred_fallthru
          _
        // Predicated region
        $region41: #{idnn_forward.1} parent=11 // pred_check
          %p305 = pneg %p217
        $region42: #{idnn_forward.1} parent=11 // pred_check_branch
          %307 = sbr.rel (%p305) target = $region44
        $region43: #{idnn_forward.1} parent=11 // pred_region
          _
        $region44: #{idnn_forward.1} parent=11 // pred_fallthru
          _
      $region12: #{idnn_forward.1} parent=5 // pred_fallthru
        _
      %p308 = scmp.lt.s32.totalorder %s23, 2
      // Predicated region
      $region45: #{idnn_forward.1} parent=5 // pred_check
        %p309 = pneg %p308
      $region46: #{idnn_forward.1} parent=5 // pred_check_branch
        %311 = sbr.rel (%p309) target = $region48
      $region47: #{idnn_forward.1} parent=5 // pred_region
        // Predicated region
        $region49: #{idnn_forward.1} parent=47 // pred_check
          %p312 = pneg %p43
        $region50: #{idnn_forward.1} parent=47 // pred_check_branch
          %314 = sbr.rel (%p312) target = $region52
        $region51: #{idnn_forward.1} parent=47 // pred_region
          %p315 = scmp.lt.s32.totalorder %s23, 1
          %s316 = scalar_select %p315, %s23, 1
          %s317 = smul.addr %s316, 3
          %s318 = smul.addr %s317, 8
          %s319 = scalar_lea.vmem %s0, %s318
        $region52: #{idnn_forward.1} parent=47 // pred_fallthru
          _
      $region48: #{idnn_forward.1} parent=5 // pred_fallthru
        _
      %p320 = scmp.le.s32.totalorder 1, %s23
      %p321 = scmp.lt.s32.totalorder %s23, 3
      %p322 = pnand %p320, %p321
      %p323 = pneg %p322
      // Predicated region
      $region53: #{idnn_forward.1} parent=5 // pred_check
        _
      $region54: #{idnn_forward.1} parent=5 // pred_check_branch
        %325 = sbr.rel (%p322) target = $region56
      $region55: #{idnn_forward.1} parent=5 // pred_region
        %s326 = ssub.s32 %s23, 1
        %p327 = scmp.lt.s32.totalorder %s28, 1
        %s328 = scalar_select %p327, %s28, 1
        %s329 = smul.addr %s328, 3
        %s330 = smul.addr %s329, 8
        %s331 = scalar_lea.vmem %s0, %s330
        %p332 = pneg %p49
        %p333 = pneg %p46
        %p334 = pneg %p70
        %p335 = pneg %p67
        %p336 = pneg %p91
        %p337 = pneg %p88
        %p338 = pneg %p112
        %p339 = pneg %p109
        %p340 = pneg %p133
        %p341 = pneg %p130
        %p342 = pneg %p154
        %p343 = pneg %p151
        %p344 = pneg %p175
        %p345 = pneg %p172
        %p346 = pneg %p196
        %p347 = pneg %p193
        %p348 = pneg %p217
        %p349 = pneg %p214
        %p350 = pneg %p243
        %p351 = pneg %p240
        %s352 = sand.u32 %s230, 1
        %s353 = scalar_lea.sflag [#allocation3], %s352
        %s354 = sand.u32 %s230, 1
        %s355 = smul.addr %s354, 8
        %s356 = scalar_lea.vmem [#allocation2], %s355
        %p357 = pneg %p269
        %p358 = pneg %p266
        %s359 = sand.u32 %s256, 1
        %s360 = scalar_lea.sflag [#allocation5], %s359
        %s361 = sand.u32 %s256, 1
        %s362 = smul.addr %s361, 8
        %s363 = scalar_lea.vmem [#allocation4], %s362
        %p364 = scmp.lt.s32.totalorder %s28, 1
        %s365 = scalar_select %p364, %s28, 1
        %s366 = smul.addr %s365, 3
        %s367 = smul.addr %s366, 8
        %s368 = scalar_lea.vmem %s0, %s367
        %v370 = vld [vmem:[%s368] sm:$0xff]
        %v371 = vpack.c.bf16 %v370, %v370
        %v372 = vld [vmem:[%s368 + $0x8] sm:$0xff]
        %v373 = vld [vmem:[%s368 + $0x10] sm:$0xff]
        %v374 = vpack.c.bf16 %v372, %v372
        %v375 = vpack.c.bf16 %v373, %v373
        %v376 = vld [vmem:[%s8] sm:$0x1]
        %v377 = vld [vmem:[%s8 + $0x1] sm:$0x1]
        %v378 = vld [vmem:[%s8 + $0x2] sm:$0x1]
        %v379 = vld [vmem:[%s8 + $0x3] sm:$0x1]
        %v380 = vld [vmem:[%s8 + $0x4] sm:$0x1]
        %v381 = vld [vmem:[%s8 + $0x5] sm:$0x1]
        %v382 = vld [vmem:[%s1] sm:$0xf]
        %v383 = vld [vmem:[%s1 + $0x4] sm:$0xf]
        %v384 = vld [vmem:[%s1 + $0x8] sm:$0xf]
        %v385 = vld [vmem:[%s1 + $0xc] sm:$0xf]
        %v386 = vld [vmem:[%s1 + $0x10] sm:$0xf]
        %v387 = vld [vmem:[%s1 + $0x14] sm:$0xf]
        %v388 = vld [vmem:[%s1 + $0x18] sm:$0xf]
        %v389 = vld [vmem:[%s1 + $0x1c] sm:$0xf]
        %v390 = vld [vmem:[%s1 + $0x20] sm:$0xf]
        %v391 = vld [vmem:[%s1 + $0x24] sm:$0xf]
        %v392 = vld [vmem:[%s1 + $0x28] sm:$0xf]
        %v393 = vld [vmem:[%s1 + $0x2c] sm:$0xf]
        %v394 = vld [vmem:[%s1 + $0x30] sm:$0xf]
        %v395 = vld [vmem:[%s1 + $0x34] sm:$0xf]
        %v396 = vld [vmem:[%s1 + $0x38] sm:$0xf]
        %v397 = vld [vmem:[%s1 + $0x3c] sm:$0xf]
        %v398 = vld [vmem:[%s2] sm:$0xf]
        %v399 = vld [vmem:[%s2 + $0x4] sm:$0xf]
        %v400 = vld [vmem:[%s2 + $0x8] sm:$0xf]
        %v401 = vld [vmem:[%s2 + $0xc] sm:$0xf]
        %v402 = vld [vmem:[%s2 + $0x10] sm:$0xf]
        %v403 = vld [vmem:[%s2 + $0x14] sm:$0xf]
        %v404 = vld [vmem:[%s2 + $0x18] sm:$0xf]
        %v405 = vld [vmem:[%s2 + $0x1c] sm:$0xf]
        %v406 = vld [vmem:[%s2 + $0x20] sm:$0xf]
        %v407 = vld [vmem:[%s2 + $0x24] sm:$0xf]
        %v408 = vld [vmem:[%s2 + $0x28] sm:$0xf]
        %v409 = vld [vmem:[%s2 + $0x2c] sm:$0xf]
        %v410 = vld [vmem:[%s2 + $0x30] sm:$0xf]
        %v411 = vld [vmem:[%s2 + $0x34] sm:$0xf]
        %v412 = vld [vmem:[%s2 + $0x38] sm:$0xf]
        %v413 = vld [vmem:[%s2 + $0x3c] sm:$0xf]
        %416 = vrot.lane.b32.xlu0 %v374, 64
        %v417 = vpop.permute.xlu0 %416
        %418 = vrot.lane.b32.xlu0 %v375, 64
        %v419 = vpop.permute.xlu0 %418
        %vm420 = vcmask 523264
        %v421 = vsel %vm420, %v417, %v419
        %v439 = vunpack.c.l.b16 %v398
        %v440 = vunpack.c.l.b16 %v399
        %v441 = vunpack.c.l.b16 %v400
        %v442 = vunpack.c.l.b16 %v401
        %v443 = vunpack.c.l.b16 %v402
        %v444 = vunpack.c.l.b16 %v403
        %v445 = vunpack.c.l.b16 %v404
        %v446 = vunpack.c.l.b16 %v405
        %v447 = vunpack.c.l.b16 %v406
        %v448 = vunpack.c.l.b16 %v407
        %v449 = vunpack.c.l.b16 %v408
        %v450 = vunpack.c.l.b16 %v409
        %v451 = vunpack.c.l.b16 %v410
        %v452 = vunpack.c.l.b16 %v411
        %v453 = vunpack.c.l.b16 %v412
        %v454 = vunpack.c.l.b16 %v413
        %v455 = vpack.c.b16 %v440, %v439
        %v456 = vpack.c.b16 %v442, %v441
        %v457 = vpack.c.b16 %v444, %v443
        %v458 = vpack.c.b16 %v446, %v445
        %v459 = vpack.c.b16 %v448, %v447
        %v460 = vpack.c.b16 %v450, %v449
        %v461 = vpack.c.b16 %v452, %v451
        %v462 = vpack.c.b16 %v454, %v453
        %471 = vmatpush.bf16.msra.mxu0 %v462
        %472 = vmatpush.bf16.msra.mxu0 %v461
        %473 = vmatpush.bf16.msra.mxu0 %v460
        %474 = vmatpush.bf16.msra.mxu0 %v459
        %475 = vmatpush.bf16.msra.mxu0 %v458
        %476 = vmatpush.bf16.msra.mxu0 %v457
        %477 = vmatpush.bf16.msra.mxu0 %v456
        %478 = vmatpush.bf16.msra.mxu0 %v455
        %479 = vmatmul.bf16.gmra.mxu0 %v421
        %v480 = vpop.f32.mrf.mxu0
        %v481 = vadd.f32 0.0, %v480
        %v482 = vpop.f32.mrf.mxu0
        %483 = vdwg.mxu0
        %v500 = vunpack.c.l.b16 %v382
        %v501 = vunpack.c.l.b16 %v383
        %v502 = vunpack.c.l.b16 %v384
        %v503 = vunpack.c.l.b16 %v385
        %v504 = vunpack.c.l.b16 %v386
        %v505 = vunpack.c.l.b16 %v387
        %v506 = vunpack.c.l.b16 %v388
        %v507 = vunpack.c.l.b16 %v389
        %v508 = vunpack.c.l.b16 %v390
        %v509 = vunpack.c.l.b16 %v391
        %v510 = vunpack.c.l.b16 %v392
        %v511 = vunpack.c.l.b16 %v393
        %v512 = vunpack.c.l.b16 %v394
        %v513 = vunpack.c.l.b16 %v395
        %v514 = vunpack.c.l.b16 %v396
        %v515 = vunpack.c.l.b16 %v397
        %v516 = vpack.c.b16 %v501, %v500
        %v517 = vpack.c.b16 %v503, %v502
        %v518 = vpack.c.b16 %v505, %v504
        %v519 = vpack.c.b16 %v507, %v506
        %v520 = vpack.c.b16 %v509, %v508
        %v521 = vpack.c.b16 %v511, %v510
        %v522 = vpack.c.b16 %v513, %v512
        %v523 = vpack.c.b16 %v515, %v514
        %532 = vmatpush.bf16.msra.mxu0 %v523
        %533 = vmatpush.bf16.msra.mxu0 %v522
        %534 = vmatpush.bf16.msra.mxu0 %v521
        %535 = vmatpush.bf16.msra.mxu0 %v520
        %536 = vmatpush.bf16.msra.mxu0 %v519
        %537 = vmatpush.bf16.msra.mxu0 %v518
        %538 = vmatpush.bf16.msra.mxu0 %v517
        %539 = vmatpush.bf16.msra.mxu0 %v516
        %540 = vmatmul.bf16.gmra.mxu0 %v371
        %v541 = vpop.f32.mrf.mxu0
        %v542 = vadd.f32 %v481, %v541
        %v543 = vpop.f32.mrf.mxu0
        %544 = vdwg.mxu0
        %v545 = vperm.slane %v376, 0
        %v546 = vadd.f32 %v542, %v545
        %v547 = vmax.f32 %v546, 0.0
        %v548 = vpack.c.bf16 %v547, %v547
        %v549 = vld [vmem:[%s3] sm:$0xf]
        %v550 = vld [vmem:[%s3 + $0x4] sm:$0xf]
        %v551 = vld [vmem:[%s3 + $0x8] sm:$0xf]
        %v552 = vld [vmem:[%s3 + $0xc] sm:$0xf]
        %v553 = vld [vmem:[%s3 + $0x10] sm:$0xf]
        %v554 = vld [vmem:[%s3 + $0x14] sm:$0xf]
        %v555 = vld [vmem:[%s3 + $0x18] sm:$0xf]
        %v556 = vld [vmem:[%s3 + $0x1c] sm:$0xf]
        %v557 = vperm.slane %v377, 0
        %v566 = vunpack.c.l.b16 %v549
        %v567 = vunpack.c.l.b16 %v550
        %v568 = vunpack.c.l.b16 %v551
        %v569 = vunpack.c.l.b16 %v552
        %v570 = vunpack.c.l.b16 %v553
        %v571 = vunpack.c.l.b16 %v554
        %v572 = vunpack.c.l.b16 %v555
        %v573 = vunpack.c.l.b16 %v556
        %v574 = vpack.c.b16 %v567, %v566
        %v575 = vpack.c.b16 %v569, %v568
        %v576 = vpack.c.b16 %v571, %v570
        %v577 = vpack.c.b16 %v573, %v572
        %vm582 = vcmask 523264
        %v584 = vsel %vm582, %v548, 0
        %586 = vmatpush.bf16.msra.mxu0 0
        %587 = vmatpush.bf16.msra.mxu0 0
        %588 = vmatpush.bf16.msra.mxu0 0
        %589 = vmatpush.bf16.msra.mxu0 0
        %590 = vmatpush.bf16.msra.mxu0 %v577
        %591 = vmatpush.bf16.msra.mxu0 %v576
        %592 = vmatpush.bf16.msra.mxu0 %v575
        %593 = vmatpush.bf16.msra.mxu0 %v574
        %594 = vmatmul.bf16.gmra.mxu0 %v584
        %v595 = vpop.f32.mrf.mxu0
        %v596 = vadd.f32 %v557, %v595
        %v597 = vpop.f32.mrf.mxu0
        %598 = vdwg.mxu0
        %v599 = vmax.f32 %v596, 0.0
        %v600 = vpack.c.bf16 %v599, %v599
        %v601 = vld [vmem:[%s4] sm:$0xf]
        %v602 = vld [vmem:[%s4 + $0x4] sm:$0xf]
        %v603 = vld [vmem:[%s4 + $0x8] sm:$0xf]
        %v604 = vld [vmem:[%s4 + $0xc] sm:$0xf]
        %v605 = vperm.slane %v378, 0
        %v610 = vunpack.c.l.b16 %v601
        %v611 = vunpack.c.l.b16 %v602
        %v612 = vunpack.c.l.b16 %v603
        %v613 = vunpack.c.l.b16 %v604
        %v614 = vpack.c.b16 %v611, %v610
        %v615 = vpack.c.b16 %v613, %v612
        %vm618 = vcmask 261120
        %v620 = vsel %vm618, %v600, 0
        %622 = vmatpush.bf16.msra.mxu0 0
        %623 = vmatpush.bf16.msra.mxu0 0
        %624 = vmatpush.bf16.msra.mxu0 0
        %625 = vmatpush.bf16.msra.mxu0 0
        %626 = vmatpush.bf16.msra.mxu0 0
        %627 = vmatpush.bf16.msra.mxu0 0
        %628 = vmatpush.bf16.msra.mxu0 %v615
        %629 = vmatpush.bf16.msra.mxu0 %v614
        %630 = vmatmul.bf16.gmra.mxu0 %v620
        %v631 = vpop.f32.mrf.mxu0
        %v632 = vadd.f32 %v605, %v631
        %v633 = vpop.f32.mrf.mxu0
        %634 = vdwg.mxu0
        %v635 = vmax.f32 %v632, 0.0
        %v636 = vpack.c.bf16 %v635, %v635
        %v637 = vld [vmem:[%s5] sm:$0xf]
        %v638 = vld [vmem:[%s5 + $0x4] sm:$0xf]
        %v639 = vperm.slane %v379, 0
        %v642 = vunpack.c.l.b16 %v637
        %v643 = vunpack.c.l.b16 %v638
        %v644 = vpack.c.b16 %v643, %v642
        %vm646 = vcmask 130048
        %v648 = vsel %vm646, %v636, 0
        %650 = vmatpush.bf16.msra.mxu0 0
        %651 = vmatpush.bf16.msra.mxu0 0
        %652 = vmatpush.bf16.msra.mxu0 0
        %653 = vmatpush.bf16.msra.mxu0 0
        %654 = vmatpush.bf16.msra.mxu0 0
        %655 = vmatpush.bf16.msra.mxu0 0
        %656 = vmatpush.bf16.msra.mxu0 0
        %657 = vmatpush.bf16.msra.mxu0 %v644
        %658 = vmatmul.bf16.gmra.mxu0 %v648
        %v659 = vpop.f32.mrf.mxu0
        %v660 = vadd.f32 %v639, %v659
        %v661 = vpop.f32.mrf.mxu0
        %662 = vdwg.mxu0
        %v663 = vmax.f32 %v660, 0.0
        %v664 = vpack.c.bf16 %v663, %v663
        %v665 = vld [vmem:[%s6] sm:$0xf]
        %v666 = vld [vmem:[%s6 + $0x4] sm:$0xf]
        %v667 = vld [vmem:[%s6 + $0x8] sm:$0xf]
        %v668 = vld [vmem:[%s6 + $0xc] sm:$0xf]
        %v669 = vperm.slane %v380, 0
        %v674 = vunpack.c.l.b16 %v665
        %v675 = vunpack.c.l.b16 %v666
        %v676 = vunpack.c.l.b16 %v667
        %v677 = vunpack.c.l.b16 %v668
        %v678 = vpack.c.b16 %v675, %v674
        %v679 = vpack.c.b16 %v677, %v676
        %v683 = vsel %vm618, %v664, 0
        %685 = vmatpush.bf16.msra.mxu0 0
        %686 = vmatpush.bf16.msra.mxu0 0
        %687 = vmatpush.bf16.msra.mxu0 0
        %688 = vmatpush.bf16.msra.mxu0 0
        %689 = vmatpush.bf16.msra.mxu0 0
        %690 = vmatpush.bf16.msra.mxu0 0
        %691 = vmatpush.bf16.msra.mxu0 %v679
        %692 = vmatpush.bf16.msra.mxu0 %v678
        %693 = vmatmul.bf16.gmra.mxu0 %v683
        %v694 = vpop.f32.mrf.mxu0
        %v695 = vadd.f32 %v669, %v694
        %v696 = vpop.f32.mrf.mxu0
        %697 = vdwg.mxu0
        %v698 = vmax.f32 %v695, 0.0
        %v699 = vpack.c.bf16 %v698, %v698
        %v700 = vld [vmem:[%s7] sm:$0xf]
        %v701 = vld [vmem:[%s7 + $0x4] sm:$0xf]
        %v702 = vld [vmem:[%s7 + $0x8] sm:$0xf]
        %v703 = vld [vmem:[%s7 + $0xc] sm:$0xf]
        %v704 = vld [vmem:[%s7 + $0x10] sm:$0xf]
        %v705 = vld [vmem:[%s7 + $0x14] sm:$0xf]
        %v706 = vld [vmem:[%s7 + $0x18] sm:$0xf]
        %v707 = vld [vmem:[%s7 + $0x1c] sm:$0xf]
        %v708 = vperm.slane %v381, 0
        %v717 = vunpack.c.l.b16 %v700
        %v718 = vunpack.c.l.b16 %v701
        %v719 = vunpack.c.l.b16 %v702
        %v720 = vunpack.c.l.b16 %v703
        %v721 = vunpack.c.l.b16 %v704
        %v722 = vunpack.c.l.b16 %v705
        %v723 = vunpack.c.l.b16 %v706
        %v724 = vunpack.c.l.b16 %v707
        %v725 = vpack.c.b16 %v718, %v717
        %v726 = vpack.c.b16 %v720, %v719
        %v727 = vpack.c.b16 %v722, %v721
        %v728 = vpack.c.b16 %v724, %v723
        %v734 = vsel %vm582, %v699, 0
        %736 = vmatpush.bf16.msra.mxu0 0
        %737 = vmatpush.bf16.msra.mxu0 0
        %738 = vmatpush.bf16.msra.mxu0 0
        %739 = vmatpush.bf16.msra.mxu0 0
        %740 = vmatpush.bf16.msra.mxu0 %v728
        %741 = vmatpush.bf16.msra.mxu0 %v727
        %742 = vmatpush.bf16.msra.mxu0 %v726
        %743 = vmatpush.bf16.msra.mxu0 %v725
        %744 = vmatmul.bf16.gmra.mxu0 %v734
        %v745 = vpop.f32.mrf.mxu0
        %v746 = vadd.f32 %v708, %v745
        %v747 = vpop.f32.mrf.mxu0
        %748 = vdwg.mxu0
        %749 = vst.msk [vmem:[%s356] sm:$0xff] %vm582, %v746
        %750 = vst.msk [vmem:[%s363] sm:$0xff] %vm582, %v372
        %s751 = sand.u32 %s230, 1
        %s752 = scalar_lea.sflag [#allocation3], %s751
        %s753 = sand.u32 %s230, 1
        %s754 = smul.addr %s753, 8
        %s755 = scalar_lea.vmem [#allocation2], %s754
        %s756 = sand.u32 %s256, 1
        %s757 = scalar_lea.sflag [#allocation5], %s756
        %s758 = sand.u32 %s256, 1
        %s759 = smul.addr %s758, 8
        %s760 = scalar_lea.vmem [#allocation4], %s759
        // Predicated region
        $region57: #{idnn_forward.1} parent=55 // pred_check
          %p761 = pneg %p240
        $region58: #{idnn_forward.1} parent=55 // pred_check_branch
          %763 = sbr.rel (%p761) target = $region60
        $region59: #{idnn_forward.1} parent=55 // pred_region
          %765 = vsyncadd %s752, 0
          %s766 = smul.addr %s28, 8
          %s767 = scalar_lea.hbm %s9, %s766
          %s769 = sshll.u32 %s755, 4
          %s770 = int_to_ptr.vmem [resolvable:$true] %s769
          %s771 = sshll.u32 %s767, 4
          %s772 = int_to_ptr.hbm [resolvable:$true] %s771
          %774 = dma.vmem_to_hbm [thread:$0]  %s770, 128, %s772, %s752
        $region60: #{idnn_forward.1} parent=55 // pred_fallthru
          _
        // Predicated region
        $region61: #{idnn_forward.1} parent=55 // pred_check
          %p775 = pneg %p266
        $region62: #{idnn_forward.1} parent=55 // pred_check_branch
          %777 = sbr.rel (%p775) target = $region64
        $region63: #{idnn_forward.1} parent=55 // pred_region
          %779 = vsyncadd %s757, 0
          %s780 = smul.addr %s28, 8
          %s781 = scalar_lea.hbm %s10, %s780
          %s783 = sshll.u32 %s760, 4
          %s784 = int_to_ptr.vmem [resolvable:$true] %s783
          %s785 = sshll.u32 %s781, 4
          %s786 = int_to_ptr.hbm [resolvable:$true] %s785
          %788 = dma.vmem_to_hbm [thread:$0]  %s784, 128, %s786, %s757
        $region64: #{idnn_forward.1} parent=55 // pred_fallthru
          _
      $region56: #{idnn_forward.1} parent=5 // pred_fallthru
        _
      %p789 = scmp.le.s32.totalorder 2, %s23
      // Predicated region
      $region65: #{idnn_forward.1} parent=5 // pred_check
        %p790 = pneg %p789
      $region66: #{idnn_forward.1} parent=5 // pred_check_branch
        %792 = sbr.rel (%p790) target = $region68
      $region67: #{idnn_forward.1} parent=5 // pred_region
        %s793 = ssub.s32 %s23, 2
        // Predicated region
        $region69: #{idnn_forward.1} parent=67 // pred_check
          %p794 = pneg %p246
        $region70: #{idnn_forward.1} parent=67 // pred_check_branch
          %796 = sbr.rel (%p794) target = $region72
        $region71: #{idnn_forward.1} parent=67 // pred_region
          %s797 = sand.u32 %s231, 1
          %s798 = scalar_lea.sflag [#allocation3], %s797
          %s799 = sand.u32 %s231, 1
          %s800 = smul.addr %s799, 8
          %s801 = scalar_lea.vmem [#allocation2], %s800
          %803 = dma.done %s798, 128
        $region72: #{idnn_forward.1} parent=67 // pred_fallthru
          _
        // Predicated region
        $region73: #{idnn_forward.1} parent=67 // pred_check
          %p804 = pneg %p272
        $region74: #{idnn_forward.1} parent=67 // pred_check_branch
          %806 = sbr.rel (%p804) target = $region76
        $region75: #{idnn_forward.1} parent=67 // pred_region
          %s807 = sand.u32 %s257, 1
          %s808 = scalar_lea.sflag [#allocation5], %s807
          %s809 = sand.u32 %s257, 1
          %s810 = smul.addr %s809, 8
          %s811 = scalar_lea.vmem [#allocation4], %s810
          %813 = dma.done %s808, 128
        $region76: #{idnn_forward.1} parent=67 // pred_fallthru
          _
      $region68: #{idnn_forward.1} parent=5 // pred_fallthru
        _
    $region6: #{idnn_forward.1} parent=1 // loop_footer
      %s27 = sadd.s32 1, %s23
    $region7: #{idnn_forward.1} parent=1 // loop_footer_branch
      %22 = sbr.rel target = $region3
    $region8: #{idnn_forward.1} parent=1 // loop_exit
      _
    %814 = vsyncpa [#allocation3], 1
    %s815 = scalar_lea.sflag [#allocation3], 1
    %816 = vsyncpa %s815, 1
    %817 = vsyncpa [#allocation5], 1
    %s818 = scalar_lea.sflag [#allocation5], 1
    %819 = vsyncpa %s818, 1

</llo_original>
